<compile_context>
chip_gen: v5e
topology: v5e:2x2
jax: 0.10.0
libtpu: 0.0.40
codegen_flags: <defaults>
</compile_context>

<pallas_src>
import functools

import jax
import jax.numpy as jnp
from jax import lax
from jax.experimental import pallas as pl
from jax.experimental.pallas import tpu as pltpu

_LANE = 128
_SUBLANE = 8


def _round_up(x, m):
    return (x + m - 1) // m * m


def _choose_batch_tiling(batch, tb_max=1024):
    """Pick (n_tiles, tile_rows, padded_batch).

    Single tile for small batches (common RL policy-step case).  For larger
    batches use an EVEN tile count so dimension_semantics=("parallel",) maps
    one tile per TensorCore on v7x; the extra grid step costs ~0.35us on
    single-TC chips (v5e/v6e), negligible here.  Tile size is derived from the
    tile count (not the other way round) so the tail tile is never mostly
    padding.
    """
    if batch <= 512:
        n_tiles = 1
    else:
        n_tiles = 2 * (-(-batch // (2 * tb_max)))
    tb = _round_up(-(-batch // n_tiles), _SUBLANE)
    return n_tiles, tb, n_tiles * tb


def prepare_params(params):
    """Pad / pack weights ONCE (outside the jitted forward).

    Returns float32, lane-dense arrays:
      w1: [obs_dim, h_p]   b1: [1, h_p]
      w2: [h_p,    h_p]    b2: [1, h_p]
      wh: [h_p, head_p]    bh: [1, head_p]   (col 0 = value head,
                                              cols 1..A = advantage head,
                                              remaining cols zero)
    """
    f32 = jnp.float32
    obs_dim, H = params["w1"].shape
    A = params["wa"].shape[1]
    h_p = _round_up(H, _LANE)
    head_p = _round_up(1 + A, _LANE)

    w1 = jnp.zeros((obs_dim, h_p), f32).at[:, :H].set(params["w1"].astype(f32))
    b1 = jnp.zeros((1, h_p), f32).at[:, :H].set(params["b1"].astype(f32))
    w2 = jnp.zeros((h_p, h_p), f32).at[:H, :H].set(params["w2"].astype(f32))
    b2 = jnp.zeros((1, h_p), f32).at[:, :H].set(params["b2"].astype(f32))
    wh = (jnp.zeros((h_p, head_p), f32)
          .at[:H, 0:1].set(params["wv"].astype(f32))
          .at[:H, 1:1 + A].set(params["wa"].astype(f32)))
    bh = (jnp.zeros((1, head_p), f32)
          .at[:, 0:1].set(params["bv"].astype(f32))
          .at[:, 1:1 + A].set(params["ba"].astype(f32)))
    return dict(w1=w1, b1=b1, w2=w2, b2=b2, wh=wh, bh=bh)


def _dueling_mlp_kernel(x_ref, w1_ref, b1_ref, w2_ref, b2_ref, wh_ref, bh_ref,
                        head_ref, asum_ref, *, batch, tile_rows):
    # Feature MLP: Linear -> Tanh -> Linear -> Tanh.  x is unpadded along the
    # obs axis (K = obs_dim on the MXU); only the batch axis is tiled/padded.
    x = x_ref[...]
    h1 = jnp.tanh(jnp.dot(x, w1_ref[...], preferred_element_type=jnp.float32)
                  + b1_ref[...])
    h2 = jnp.tanh(jnp.dot(h1, w2_ref[...], preferred_element_type=jnp.float32)
                  + b2_ref[...])
    # Fused dueling head: one matmul producing packed [v | a | zero-pad] slab,
    # stored as a single lane-dense (last dim = 128) output.
    head = (jnp.dot(h2, wh_ref[...], preferred_element_type=jnp.float32)
            + bh_ref[...])
    head_ref[...] = head

    # Masked per-tile column sums of the slab for the GLOBAL a.mean():
    # padded batch rows (row >= batch) are excluded so they cannot leak into
    # the mean; padded lane columns are already zero (zero wh/bh columns).
    row = (pl.program_id(0) * tile_rows
           + lax.broadcasted_iota(jnp.int32, head.shape, 0))
    colsum = jnp.sum(jnp.where(row < batch, head, 0.0), axis=0)
    asum_ref[...] = jnp.broadcast_to(colsum[None, None, :], asum_ref.shape)


@functools.partial(jax.jit, static_argnames=("n_actions",))
def dueling_model_forward(x, prep, *, n_actions):
    """x: [B, obs_dim]. prep: output of prepare_params. Returns (v, a, q)."""
    x = x.astype(jnp.float32)
    B, obs_dim = x.shape
    A = n_actions
    h_p = prep["w1"].shape[1]
    head_p = prep["wh"].shape[1]

    n_tiles, tb, b_p = _choose_batch_tiling(B)
    xp = x if b_p == B else jnp.zeros((b_p, obs_dim), jnp.float32).at[:B].set(x)

    const = lambda i: (0, 0)   # weights/biases stay VMEM-resident across tiles
    kernel = functools.partial(_dueling_mlp_kernel, batch=B, tile_rows=tb)

    head, asums = pl.pallas_call(
        kernel,
        out_shape=(
            jax.ShapeDtypeStruct((b_p, head_p), jnp.float32),
            jax.ShapeDtypeStruct((n_tiles, _SUBLANE, head_p), jnp.float32),
        ),
        grid_spec=pltpu.PrefetchScalarGridSpec(
            num_scalar_prefetch=0,
            grid=(n_tiles,),
            in_specs=[
                pl.BlockSpec((tb, obs_dim), lambda i: (i, 0)),
                pl.BlockSpec((obs_dim, h_p), const),
                pl.BlockSpec((1, h_p), const),
                pl.BlockSpec((h_p, h_p), const),
                pl.BlockSpec((1, h_p), const),
                pl.BlockSpec((h_p, head_p), const),
                pl.BlockSpec((1, head_p), const),
            ],
            out_specs=(
                pl.BlockSpec((tb, head_p), lambda i: (i, 0)),
                pl.BlockSpec((1, _SUBLANE, head_p), lambda i: (i, 0, 0)),
            ),
        ),
        compiler_params=pltpu.CompilerParams(
            dimension_semantics=("parallel",)),
    )(xp, prep["w1"], prep["b1"], prep["w2"], prep["b2"],
      prep["wh"], prep["bh"])

    v = head[:B, 0:1]
    a = head[:B, 1:1 + A]
    # Global mean over ALL elements of a (matches torch a.mean()), assembled
    # from the kernel's masked per-tile partial sums.
    a_mean = jnp.sum(asums[:, 0, 1:1 + A]) / (B * A)
    q = v + a - a_mean
    return v, a, q


def init_params(key, obs_dim, hidden, n_actions):
    ks = jax.random.split(key, 8)

    def lin(kw, kb, din, dout):
        # deterministic uniform init, roughly matching torch nn.Linear scale
        bound = 1.0 / jnp.sqrt(din)
        w = jax.random.uniform(kw, (din, dout), jnp.float32, -bound, bound)
        b = jax.random.uniform(kb, (1, dout), jnp.float32, -bound, bound)
        return w, b

    w1, b1 = lin(ks[0], ks[1], obs_dim, hidden)
    w2, b2 = lin(ks[2], ks[3], hidden, hidden)
    wv, bv = lin(ks[4], ks[5], hidden, 1)
    wa, ba = lin(ks[6], ks[7], hidden, n_actions)
    return dict(w1=w1, b1=b1, w2=w2, b2=b2, wv=wv, bv=bv, wa=wa, ba=ba)


def reference_forward(x, p):
    h1 = jnp.tanh(x @ p["w1"] + p["b1"])
    h2 = jnp.tanh(h1 @ p["w2"] + p["b2"])
    v = h2 @ p["wv"] + p["bv"]
    a = h2 @ p["wa"] + p["ba"]
    q = v + a - jnp.mean(a)
    return v, a, q


def _check(x, params, prep, n_actions, atol=1e-4):
    v, a, q = dueling_model_forward(x, prep, n_actions=n_actions)
    jax.block_until_ready((v, a, q))
    vr, ar, qr = reference_forward(x, params)
    assert v.shape == vr.shape and a.shape == ar.shape and q.shape == qr.shape
    assert jnp.allclose(v, vr, atol=atol), "v mismatch"
    assert jnp.allclose(a, ar, atol=atol), "a mismatch"
    assert jnp.allclose(q, qr, atol=atol), "q mismatch"


if __name__ == "__main__":
    OBS, H, A = 16, 32, 4   # flat obs/action spaces (MLP-only model)
    key = jax.random.PRNGKey(0)
    kx, kp, kx2 = jax.random.split(key, 3)
    params = init_params(kp, OBS, H, A)
    prep = prepare_params(params)   # padded/packed once, reused every call

    # Small demo shape (single-tile fast path).
    x_small = jax.random.normal(kx, (2, OBS), jnp.float32)
    _check(x_small, params, prep, A)

    # Multi-tile path: B=600 -> 2 tiles of 304 rows (tail-tile fix), masked
    # per-tile partial sums feed the cross-tile global mean.
    x_big = jax.random.normal(kx2, (600, OBS), jnp.float32)
    _check(x_big, params, prep, A)

    # TODO(synk): SimpleLSTM / LinearWithTraces recurrency branch of get_network()
    # has no static definition here; implemented the non-recurrent Linear+Tanh stack.
    print("KERNEL_OK")
</pallas_src>

<mosaic_0001>
module attributes {stable_mosaic.version = 11 : i64} {
  func.func @_dueling_mlp_kernel(%arg0: i32, %arg1: memref<8x16xf32, #tpu.memory_space<vmem>>, %arg2: memref<16x128xf32, #tpu.memory_space<vmem>>, %arg3: memref<1x128xf32, #tpu.memory_space<vmem>>, %arg4: memref<128x128xf32, #tpu.memory_space<vmem>>, %arg5: memref<1x128xf32, #tpu.memory_space<vmem>>, %arg6: memref<128x128xf32, #tpu.memory_space<vmem>>, %arg7: memref<1x128xf32, #tpu.memory_space<vmem>>, %arg8: memref<8x128xf32, #tpu.memory_space<vmem>>, %arg9: memref<1x8x128xf32, #tpu.memory_space<vmem>>) attributes {dimension_semantics = [#tpu.dimension_semantics<parallel>], iteration_bounds = array<i64: 1>, scalar_prefetch = 0 : i64, scratch_operands = 0 : i64, tpu.core_type = #tpu.core_type<tc>, window_params = [{transform_indices = @transform_0, window_bounds = array<i64: 8, 16>}, {pipeline_mode = #tpu.pipeline_mode<synchronous>, transform_indices = @transform_1, window_bounds = array<i64: 16, 128>}, {pipeline_mode = #tpu.pipeline_mode<synchronous>, transform_indices = @transform_2, window_bounds = array<i64: 1, 128>}, {pipeline_mode = #tpu.pipeline_mode<synchronous>, transform_indices = @transform_3, window_bounds = array<i64: 128, 128>}, {pipeline_mode = #tpu.pipeline_mode<synchronous>, transform_indices = @transform_4, window_bounds = array<i64: 1, 128>}, {pipeline_mode = #tpu.pipeline_mode<synchronous>, transform_indices = @transform_5, window_bounds = array<i64: 128, 128>}, {pipeline_mode = #tpu.pipeline_mode<synchronous>, transform_indices = @transform_6, window_bounds = array<i64: 1, 128>}, {transform_indices = @transform_7, window_bounds = array<i64: 8, 128>}, {transform_indices = @transform_8, window_bounds = array<i64: 1, 8, 128>}]} {
    %c0 = arith.constant 0 : index
    %c0_0 = arith.constant 0 : index
    %0 = vector.load %arg1[%c0, %c0_0] : memref<8x16xf32, #tpu.memory_space<vmem>>, vector<8x16xf32>
    %c0_1 = arith.constant 0 : index
    %c0_2 = arith.constant 0 : index
    %1 = vector.load %arg2[%c0_1, %c0_2] : memref<16x128xf32, #tpu.memory_space<vmem>>, vector<16x128xf32>
    %cst = arith.constant dense<0.000000e+00> : vector<8x128xf32>
    %2 = tpu.matmul %0, %1, %cst {dimension_numbers = #tpu.dot_dimension_numbers<[1], [0], [0], [1], [0, 0, 1, 1], [], []>} : vector<8x16xf32>, vector<16x128xf32>, vector<8x128xf32> -> vector<8x128xf32>
    %c0_3 = arith.constant 0 : index
    %c0_4 = arith.constant 0 : index
    %3 = vector.load %arg3[%c0_3, %c0_4] : memref<1x128xf32, #tpu.memory_space<vmem>>, vector<1x128xf32>
    %4 = vector.broadcast %3 : vector<1x128xf32> to vector<8x128xf32>
    %5 = arith.addf %2, %4 : vector<8x128xf32>
    %6 = math.tanh %5 : vector<8x128xf32>
    %c0_5 = arith.constant 0 : index
    %c0_6 = arith.constant 0 : index
    %7 = vector.load %arg4[%c0_5, %c0_6] : memref<128x128xf32, #tpu.memory_space<vmem>>, vector<128x128xf32>
    %cst_7 = arith.constant dense<0.000000e+00> : vector<8x128xf32>
    %8 = tpu.matmul %6, %7, %cst_7 {dimension_numbers = #tpu.dot_dimension_numbers<[1], [0], [0], [1], [0, 0, 1, 1], [], []>} : vector<8x128xf32>, vector<128x128xf32>, vector<8x128xf32> -> vector<8x128xf32>
    %c0_8 = arith.constant 0 : index
    %c0_9 = arith.constant 0 : index
    %9 = vector.load %arg5[%c0_8, %c0_9] : memref<1x128xf32, #tpu.memory_space<vmem>>, vector<1x128xf32>
    %10 = vector.broadcast %9 : vector<1x128xf32> to vector<8x128xf32>
    %11 = arith.addf %8, %10 : vector<8x128xf32>
    %12 = math.tanh %11 : vector<8x128xf32>
    %c0_10 = arith.constant 0 : index
    %c0_11 = arith.constant 0 : index
    %13 = vector.load %arg6[%c0_10, %c0_11] : memref<128x128xf32, #tpu.memory_space<vmem>>, vector<128x128xf32>
    %cst_12 = arith.constant dense<0.000000e+00> : vector<8x128xf32>
    %14 = tpu.matmul %12, %13, %cst_12 {dimension_numbers = #tpu.dot_dimension_numbers<[1], [0], [0], [1], [0, 0, 1, 1], [], []>} : vector<8x128xf32>, vector<128x128xf32>, vector<8x128xf32> -> vector<8x128xf32>
    %c0_13 = arith.constant 0 : index
    %c0_14 = arith.constant 0 : index
    %15 = vector.load %arg7[%c0_13, %c0_14] : memref<1x128xf32, #tpu.memory_space<vmem>>, vector<1x128xf32>
    %16 = vector.broadcast %15 : vector<1x128xf32> to vector<8x128xf32>
    %17 = arith.addf %14, %16 : vector<8x128xf32>
    %c0_15 = arith.constant 0 : index
    %c0_16 = arith.constant 0 : index
    %18 = vector.load %arg8[%c0_15, %c0_16] : memref<8x128xf32, #tpu.memory_space<vmem>>, vector<8x128xf32>
    tpu.vector_store %arg8[%c0_15, %c0_16], %17 {strides = array<i32>} : memref<8x128xf32, #tpu.memory_space<vmem>>, vector<8x128xf32>,
    %c8_i32 = arith.constant 8 : i32
    %19 = arith.muli %arg0, %c8_i32 : i32
    %20 = tpu.iota {dimensions = array<i32: 0>} : vector<8x128xi32>
    %21 = vector.broadcast %19 : i32 to vector<8x128xi32>
    %22 = arith.addi %21, %20 : vector<8x128xi32>
    %c2_i32 = arith.constant 2 : i32
    %23 = vector.broadcast %c2_i32 : i32 to vector<8x128xi32>
    %24 = arith.cmpi slt, %22, %23 : vector<8x128xi32>
    %cst_17 = arith.constant 0.000000e+00 : f32
    %25 = vector.broadcast %cst_17 : f32 to vector<8x128xf32>
    %26 = arith.select %24, %17, %25 : vector<8x128xi1>, vector<8x128xf32>
    %cst_18 = arith.constant dense<0.000000e+00> : vector<128xf32>
    %27 = vector.multi_reduction <add>, %26, %cst_18 [0] : vector<8x128xf32> to vector<128xf32>
    %28 = vector.shape_cast %27 : vector<128xf32> to vector<1x1x128xf32>
    %29 = vector.shape_cast %28 : vector<1x1x128xf32> to vector<1x1x128xf32>
    %30 = vector.broadcast %29 : vector<1x1x128xf32> to vector<1x8x128xf32>
    %c0_19 = arith.constant 0 : index
    %c0_20 = arith.constant 0 : index
    %c0_21 = arith.constant 0 : index
    %31 = vector.load %arg9[%c0_19, %c0_20, %c0_21] : memref<1x8x128xf32, #tpu.memory_space<vmem>>, vector<1x8x128xf32>
    tpu.vector_store %arg9[%c0_19, %c0_20, %c0_21], %30 {strides = array<i32>} : memref<1x8x128xf32, #tpu.memory_space<vmem>>, vector<1x8x128xf32>,
    return
  }
  func.func @transform_0(%arg0: i32) -> (i32, i32) {
    %c0_i32 = arith.constant 0 : i32
    %c0_i32_0 = arith.constant 0 : i32
    return %arg0, %c0_i32 : i32, i32
  }
  func.func @transform_1(%arg0: i32) -> (i32, i32) {
    %c0_i32 = arith.constant 0 : i32
    %c0_i32_0 = arith.constant 0 : i32
    %c0_i32_1 = arith.constant 0 : i32
    return %c0_i32, %c0_i32_0 : i32, i32
  }
  func.func @transform_2(%arg0: i32) -> (i32, i32) {
    %c0_i32 = arith.constant 0 : i32
    %c0_i32_0 = arith.constant 0 : i32
    %c0_i32_1 = arith.constant 0 : i32
    return %c0_i32, %c0_i32_0 : i32, i32
  }
  func.func @transform_3(%arg0: i32) -> (i32, i32) {
    %c0_i32 = arith.constant 0 : i32
    %c0_i32_0 = arith.constant 0 : i32
    %c0_i32_1 = arith.constant 0 : i32
    return %c0_i32, %c0_i32_0 : i32, i32
  }
  func.func @transform_4(%arg0: i32) -> (i32, i32) {
    %c0_i32 = arith.constant 0 : i32
    %c0_i32_0 = arith.constant 0 : i32
    %c0_i32_1 = arith.constant 0 : i32
    return %c0_i32, %c0_i32_0 : i32, i32
  }
  func.func @transform_5(%arg0: i32) -> (i32, i32) {
    %c0_i32 = arith.constant 0 : i32
    %c0_i32_0 = arith.constant 0 : i32
    %c0_i32_1 = arith.constant 0 : i32
    return %c0_i32, %c0_i32_0 : i32, i32
  }
  func.func @transform_6(%arg0: i32) -> (i32, i32) {
    %c0_i32 = arith.constant 0 : i32
    %c0_i32_0 = arith.constant 0 : i32
    %c0_i32_1 = arith.constant 0 : i32
    return %c0_i32, %c0_i32_0 : i32, i32
  }
  func.func @transform_7(%arg0: i32) -> (i32, i32) {
    %c0_i32 = arith.constant 0 : i32
    %c0_i32_0 = arith.constant 0 : i32
    return %arg0, %c0_i32 : i32, i32
  }
  func.func @transform_8(%arg0: i32) -> (i32, i32, i32) {
    %c0_i32 = arith.constant 0 : i32
    %c0_i32_0 = arith.constant 0 : i32
    %c0_i32_1 = arith.constant 0 : i32
    return %arg0, %c0_i32, %c0_i32_0 : i32, i32, i32
  }
}

</mosaic_0001>

<llo_original>
// kernel: dueling_model_forward.1
$region0: #{dueling_model_forward.1}
  #allocation0 [shape = 'u32[]', space=smem, size = 0x4, offset = 0x4, fixed_abs, tag = 'smem constant byte address 0x4 - core index']
  #allocation1 [shape = 'u32[72,128]{1,0:T(1,128)}', space=vmem, size = 0x9000, scoped, tag = 'internal scratch']
  %s0 = inlined_call_operand.vmem [shape: f32[8,16], index: 0, kind: input, shape index: {}]
  %s1 = inlined_call_operand.hbm [shape: f32[16,128], index: 1, kind: input, shape index: {}]
  %s2 = inlined_call_operand.vmem [shape: f32[1,128], index: 2, kind: input, shape index: {}]
  %s3 = inlined_call_operand.hbm [shape: f32[128,128], index: 3, kind: input, shape index: {}]
  %s4 = inlined_call_operand.vmem [shape: f32[1,128], index: 4, kind: input, shape index: {}]
  %s5 = inlined_call_operand.hbm [shape: f32[128,128], index: 5, kind: input, shape index: {}]
  %s6 = inlined_call_operand.vmem [shape: f32[1,128], index: 6, kind: input, shape index: {}]
  %s7 = inlined_call_operand.vmem [shape: f32[8,128], index: 7, kind: output, shape index: {0}]
  %s8 = inlined_call_operand.vmem [shape: f32[1,8,128], index: 8, kind: output, shape index: {1}]
  %9 = xla_tuple %s7, %s8
  %s10 = sld [smem:[#allocation0]]
  $region58: #{dueling_model_forward.1} parent=0
    _
  %s12 = ssub.s32 1, %s10
  %s13 = scalar_select 0, %s12, %s10
  $region1: #{dueling_model_forward.1} parent=0
    #allocation2 [shape = 'u8[8192]{0}', space=vmem, size = 0x2000, scoped, tag = 'input window, operand 1, single buffered']
    #allocation3 [shape = 's32[1]{0}', space=sflag, size = 0x4, scoped, tag = 'scoped memory for dueling_model_forward.1']
    #allocation4 [shape = 'u8[65536]{0}', space=vmem, size = 0x10000, scoped, tag = 'input window, operand 3, single buffered']
    #allocation5 [shape = 's32[1]{0}', space=sflag, size = 0x4, scoped, tag = 'scoped memory for dueling_model_forward.1']
    #allocation6 [shape = 'u8[65536]{0}', space=vmem, size = 0x10000, scoped, tag = 'input window, operand 5, single buffered']
    %14 = vsyncpa [#allocation3], 0
    %15 = vsyncpa [#allocation5], 0
    // Predicated region
    $region2: #{dueling_model_forward.1} parent=1 // pred_check
      _
    $region3: #{dueling_model_forward.1} parent=1 // pred_check_branch
      %17 = sbr.rel (0) target = $region5
    $region4: #{dueling_model_forward.1} parent=1 // pred_region
      _
    $region5: #{dueling_model_forward.1} parent=1 // pred_fallthru
      _
    // Predicated region
    $region6: #{dueling_model_forward.1} parent=1 // pred_check
      _
    $region7: #{dueling_model_forward.1} parent=1 // pred_check_branch
      %19 = sbr.rel (0) target = $region9
    $region8: #{dueling_model_forward.1} parent=1 // pred_region
      %21 = vsyncadd [#allocation3], 0
      %s22 = sshll.u32 %s1, 4
      %s23 = int_to_ptr.hbm [resolvable:$true] %s22
      %s24 = sshll.u32 [#allocation2], 4
      %s25 = int_to_ptr.vmem [resolvable:$true] %s24
      %30 = dma.hbm_to_vmem [thread:$0]  %s23, 256, %s25, [#allocation3], 128, 128, 8
    $region9: #{dueling_model_forward.1} parent=1 // pred_fallthru
      _
    // Predicated region
    $region10: #{dueling_model_forward.1} parent=1 // pred_check
      _
    $region11: #{dueling_model_forward.1} parent=1 // pred_check_branch
      %32 = sbr.rel (0) target = $region13
    $region12: #{dueling_model_forward.1} parent=1 // pred_region
      _
    $region13: #{dueling_model_forward.1} parent=1 // pred_fallthru
      _
    // Predicated region
    $region14: #{dueling_model_forward.1} parent=1 // pred_check
      _
    $region15: #{dueling_model_forward.1} parent=1 // pred_check_branch
      %34 = sbr.rel (0) target = $region17
    $region16: #{dueling_model_forward.1} parent=1 // pred_region
      %36 = vsyncadd [#allocation5], 0
      %s37 = sshll.u32 %s3, 4
      %s38 = int_to_ptr.hbm [resolvable:$true] %s37
      %s39 = sshll.u32 [#allocation4], 4
      %s40 = int_to_ptr.vmem [resolvable:$true] %s39
      %45 = dma.hbm_to_vmem [thread:$0]  %s38, 2048, %s40, [#allocation5], 128, 128, 8
    $region17: #{dueling_model_forward.1} parent=1 // pred_fallthru
      _
    // Predicated region
    $region18: #{dueling_model_forward.1} parent=1 // pred_check
      _
    $region19: #{dueling_model_forward.1} parent=1 // pred_check_branch
      %47 = sbr.rel (0) target = $region21
    $region20: #{dueling_model_forward.1} parent=1 // pred_region
      _
    $region21: #{dueling_model_forward.1} parent=1 // pred_fallthru
      _
    // Predicated region
    $region22: #{dueling_model_forward.1} parent=1 // pred_check
      _
    $region23: #{dueling_model_forward.1} parent=1 // pred_check_branch
      %49 = sbr.rel (0) target = $region25
    $region24: #{dueling_model_forward.1} parent=1 // pred_region
      %51 = vsyncadd [#allocation5], 0
      %s52 = sshll.u32 %s5, 4
      %s53 = int_to_ptr.hbm [resolvable:$true] %s52
      %s54 = sshll.u32 [#allocation6], 4
      %s55 = int_to_ptr.vmem [resolvable:$true] %s54
      %60 = dma.hbm_to_vmem [thread:$0]  %s53, 2048, %s55, [#allocation5], 128, 128, 8
    $region25: #{dueling_model_forward.1} parent=1 // pred_fallthru
      _
    // Predicated region
    $region26: #{dueling_model_forward.1} parent=1 // pred_check
      _
    $region27: #{dueling_model_forward.1} parent=1 // pred_check_branch
      %62 = sbr.rel (0) target = $region29
    $region28: #{dueling_model_forward.1} parent=1 // pred_region
      _
    $region29: #{dueling_model_forward.1} parent=1 // pred_fallthru
      _
    // Predicated region
    $region30: #{dueling_model_forward.1} parent=1 // pred_check
      _
    $region31: #{dueling_model_forward.1} parent=1 // pred_check_branch
      %64 = sbr.rel (0) target = $region33
    $region32: #{dueling_model_forward.1} parent=1 // pred_region
      %66 = dma.done [#allocation3], 256
    $region33: #{dueling_model_forward.1} parent=1 // pred_fallthru
      _
    // Predicated region
    $region34: #{dueling_model_forward.1} parent=1 // pred_check
      _
    $region35: #{dueling_model_forward.1} parent=1 // pred_check_branch
      %68 = sbr.rel (0) target = $region37
    $region36: #{dueling_model_forward.1} parent=1 // pred_region
      %70 = dma.done [#allocation5], 2048
    $region37: #{dueling_model_forward.1} parent=1 // pred_fallthru
      _
    // Predicated region
    $region38: #{dueling_model_forward.1} parent=1 // pred_check
      _
    $region39: #{dueling_model_forward.1} parent=1 // pred_check_branch
      %72 = sbr.rel (0) target = $region41
    $region40: #{dueling_model_forward.1} parent=1 // pred_region
      %74 = dma.done [#allocation5], 2048
    $region41: #{dueling_model_forward.1} parent=1 // pred_fallthru
      _
    %v75 = vld [vmem:[%s0] sm:$0xff]
    %v76 = vld [vmem:[#allocation2] sm:$0xff]
    %v77 = vld [vmem:[#allocation2 + $0x8] sm:$0xff]
    %v78 = vld [vmem:[%s2] sm:$0x1]
    %v80 = vperm.slane %v78, 0
    %vm82 = vcmask 130048
    %v84 = vsel %vm82, %v75, 0
    %86 = vmatpush.msra.mxu0 0.0
    %87 = vmatpush.msra.mxu0 0.0
    %88 = vmatpush.msra.mxu0 0.0
    %89 = vmatpush.msra.mxu0 0.0
    %90 = vmatpush.msra.mxu0 0.0
    %91 = vmatpush.msra.mxu0 0.0
    %92 = vmatpush.msra.mxu0 0.0
    %93 = vmatpush.msra.mxu0 0.0
    %94 = vmatpush.msra.mxu0 0.0
    %95 = vmatpush.msra.mxu0 0.0
    %96 = vmatpush.msra.mxu0 0.0
    %97 = vmatpush.msra.mxu0 0.0
    %98 = vmatpush.msra.mxu0 0.0
    %99 = vmatpush.msra.mxu0 0.0
    %100 = vmatpush.msra.mxu0 %v77
    %101 = vmatpush.msra.mxu0 %v76
    %102 = vmatmul.f32.gmra.mxu0 %v84
    %v103 = vpop.f32.mrf.mxu0
    %v104 = vadd.f32 %v80, %v103
    %105 = vdwg.mxu0
    %v106 = vtanh.pop %v104
    %v107 = vld [vmem:[#allocation4] sm:$0xff]
    %v108 = vld [vmem:[#allocation4 + $0x8] sm:$0xff]
    %v109 = vld [vmem:[#allocation4 + $0x10] sm:$0xff]
    %v110 = vld [vmem:[#allocation4 + $0x18] sm:$0xff]
    %v111 = vld [vmem:[#allocation4 + $0x20] sm:$0xff]
    %v112 = vld [vmem:[#allocation4 + $0x28] sm:$0xff]
    %v113 = vld [vmem:[#allocation4 + $0x30] sm:$0xff]
    %v114 = vld [vmem:[#allocation4 + $0x38] sm:$0xff]
    %v115 = vld [vmem:[#allocation4 + $0x40] sm:$0xff]
    %v116 = vld [vmem:[#allocation4 + $0x48] sm:$0xff]
    %v117 = vld [vmem:[#allocation4 + $0x50] sm:$0xff]
    %v118 = vld [vmem:[#allocation4 + $0x58] sm:$0xff]
    %v119 = vld [vmem:[#allocation4 + $0x60] sm:$0xff]
    %v120 = vld [vmem:[#allocation4 + $0x68] sm:$0xff]
    %v121 = vld [vmem:[#allocation4 + $0x70] sm:$0xff]
    %v122 = vld [vmem:[#allocation4 + $0x78] sm:$0xff]
    %v123 = vld [vmem:[%s4] sm:$0x1]
    %v125 = vperm.slane %v123, 0
    %127 = vmatpush.msra.mxu0 %v122
    %128 = vmatpush.msra.mxu0 %v121
    %129 = vmatpush.msra.mxu0 %v120
    %130 = vmatpush.msra.mxu0 %v119
    %131 = vmatpush.msra.mxu0 %v118
    %132 = vmatpush.msra.mxu0 %v117
    %133 = vmatpush.msra.mxu0 %v116
    %134 = vmatpush.msra.mxu0 %v115
    %135 = vmatpush.msra.mxu0 %v114
    %136 = vmatpush.msra.mxu0 %v113
    %137 = vmatpush.msra.mxu0 %v112
    %138 = vmatpush.msra.mxu0 %v111
    %139 = vmatpush.msra.mxu0 %v110
    %140 = vmatpush.msra.mxu0 %v109
    %141 = vmatpush.msra.mxu0 %v108
    %142 = vmatpush.msra.mxu0 %v107
    %143 = vmatmul.f32.gmra.mxu0 %v106
    %v144 = vpop.f32.mrf.mxu0
    %v145 = vadd.f32 %v125, %v144
    %146 = vdwg.mxu0
    %v147 = vtanh.pop %v145
    %v148 = vld [vmem:[#allocation6] sm:$0xff]
    %v149 = vld [vmem:[#allocation6 + $0x8] sm:$0xff]
    %v150 = vld [vmem:[#allocation6 + $0x10] sm:$0xff]
    %v151 = vld [vmem:[#allocation6 + $0x18] sm:$0xff]
    %v152 = vld [vmem:[#allocation6 + $0x20] sm:$0xff]
    %v153 = vld [vmem:[#allocation6 + $0x28] sm:$0xff]
    %v154 = vld [vmem:[#allocation6 + $0x30] sm:$0xff]
    %v155 = vld [vmem:[#allocation6 + $0x38] sm:$0xff]
    %v156 = vld [vmem:[#allocation6 + $0x40] sm:$0xff]
    %v157 = vld [vmem:[#allocation6 + $0x48] sm:$0xff]
    %v158 = vld [vmem:[#allocation6 + $0x50] sm:$0xff]
    %v159 = vld [vmem:[#allocation6 + $0x58] sm:$0xff]
    %v160 = vld [vmem:[#allocation6 + $0x60] sm:$0xff]
    %v161 = vld [vmem:[#allocation6 + $0x68] sm:$0xff]
    %v162 = vld [vmem:[#allocation6 + $0x70] sm:$0xff]
    %v163 = vld [vmem:[#allocation6 + $0x78] sm:$0xff]
    %v164 = vld [vmem:[%s6] sm:$0x1]
    %v166 = vperm.slane %v164, 0
    %168 = vmatpush.msra.mxu0 %v163
    %169 = vmatpush.msra.mxu0 %v162
    %170 = vmatpush.msra.mxu0 %v161
    %171 = vmatpush.msra.mxu0 %v160
    %172 = vmatpush.msra.mxu0 %v159
    %173 = vmatpush.msra.mxu0 %v158
    %174 = vmatpush.msra.mxu0 %v157
    %175 = vmatpush.msra.mxu0 %v156
    %176 = vmatpush.msra.mxu0 %v155
    %177 = vmatpush.msra.mxu0 %v154
    %178 = vmatpush.msra.mxu0 %v153
    %179 = vmatpush.msra.mxu0 %v152
    %180 = vmatpush.msra.mxu0 %v151
    %181 = vmatpush.msra.mxu0 %v150
    %182 = vmatpush.msra.mxu0 %v149
    %183 = vmatpush.msra.mxu0 %v148
    %184 = vmatmul.f32.gmra.mxu0 %v147
    %v185 = vpop.f32.mrf.mxu0
    %v186 = vadd.f32 %v166, %v185
    %187 = vdwg.mxu0
    %188 = vst [vmem:[%s7] sm:$0xff] %v186
    %s189 = smul.u32 0, 8
    %v190 = vlaneseq
    %v191 = vshrl.u32 %v190, 7
    %v192 = vstv %s189
    %v193 = vadd.s32 %v192, %v191
    %vm194 = vcmp.lt.s32.totalorder %v193, 2
    %v195 = vsel %vm194, %v186, 0.0
    %v196 = vrot.slane %v195, 4
    %v197 = vadd.f32 %v195, %v196
    %v198 = vrot.slane %v197, 2
    %v199 = vadd.f32 %v197, %v198
    %v200 = vrot.slane %v199, 1
    %v201 = vadd.f32 %v199, %v200
    %202 = vst [vmem:[%s8] sm:$0xff] %v201
    // Predicated region
    $region42: #{dueling_model_forward.1} parent=1 // pred_check
      _
    $region43: #{dueling_model_forward.1} parent=1 // pred_check_branch
      %204 = sbr.rel (0) target = $region45
    $region44: #{dueling_model_forward.1} parent=1 // pred_region
      _
    $region45: #{dueling_model_forward.1} parent=1 // pred_fallthru
      _
    // Predicated region
    $region46: #{dueling_model_forward.1} parent=1 // pred_check
      _
    $region47: #{dueling_model_forward.1} parent=1 // pred_check_branch
      %206 = sbr.rel (0) target = $region49
    $region48: #{dueling_model_forward.1} parent=1 // pred_region
      _
    $region49: #{dueling_model_forward.1} parent=1 // pred_fallthru
      _
    // Predicated region
    $region50: #{dueling_model_forward.1} parent=1 // pred_check
      _
    $region51: #{dueling_model_forward.1} parent=1 // pred_check_branch
      %208 = sbr.rel (0) target = $region53
    $region52: #{dueling_model_forward.1} parent=1 // pred_region
      _
    $region53: #{dueling_model_forward.1} parent=1 // pred_fallthru
      _
    // Predicated region
    $region54: #{dueling_model_forward.1} parent=1 // pred_check
      _
    $region55: #{dueling_model_forward.1} parent=1 // pred_check_branch
      %210 = sbr.rel (0) target = $region57
    $region56: #{dueling_model_forward.1} parent=1 // pred_region
      _
    $region57: #{dueling_model_forward.1} parent=1 // pred_fallthru
      _
    %211 = vsyncpa [#allocation3], 1
    %212 = vsyncpa [#allocation5], 1

</llo_original>
